<compile_context>
chip_gen: v7x
topology: tpu7x:2x2x1
jax: 0.10.0
libtpu: 0.0.40
codegen_flags: <defaults>
</compile_context>

<pallas_src>
import functools

import jax
import jax.numpy as jnp
import numpy as np
from jax.experimental import pallas as pl
from jax.experimental.pallas import tpu as pltpu


def _round_up(a, b):
    return (a + b - 1) // b * b


def sun_layer1_kernel(a_ref, x_ref, w1r_ref, w1n_ref, b1_ref, h_ref, hsum_ref,
                      *, num_nodes, tile_rows):
    """Layer 1 for one row tile: h = relu(x@w1r + (A@x)@w1n + bias1)."""
    i = pl.program_id(0)

    # Upcast int8 edge counts to bf16 right before the dot (A streamed 1 B/elem).
    a = a_ref[...].astype(jnp.bfloat16)

    # Local aggregation for this row tile: A[tile, :] @ x  (f32 accumulation).
    local = jnp.dot(a, x_ref[...], preferred_element_type=jnp.float32)

    # Row tile of x, sliced from the resident full x (no duplicated DMA stream).
    start = pl.multiple_of(i * tile_rows, tile_rows)
    x_tile = x_ref[pl.ds(start, tile_rows), :]

    rn = jnp.dot(x_tile, w1r_ref[...], preferred_element_type=jnp.float32)
    rn = rn + jnp.dot(local.astype(jnp.bfloat16), w1n_ref[...],
                      preferred_element_type=jnp.float32)

    # b1_ref folds b1r + b1n + b1g + mean(x) @ w1g (grid-invariant glue).
    h = jnp.maximum(rn + b1_ref[...], 0.0)

    def store(hval):
        h_ref[...] = hval.astype(jnp.bfloat16)
        # Per-tile f32 column sum -> layer-2 global branch without re-reading h
        # from HBM.  Broadcast across the 8 sublanes of the output block; the
        # wrapper divides by 8*N.
        hsum_ref[...] = jnp.broadcast_to(
            jnp.sum(hval, axis=0, keepdims=True), hsum_ref.shape)

    if num_nodes % tile_rows != 0:
        # Only the last row tile contains padded rows; skip the mask elsewhere.
        is_last = i == pl.num_programs(0) - 1

        @pl.when(is_last)
        def _():
            row = i * tile_rows + jax.lax.broadcasted_iota(jnp.int32, h.shape, 0)
            store(jnp.where(row < num_nodes, h, 0.0))

        @pl.when(jnp.logical_not(is_last))
        def _():
            store(h)
    else:
        store(h)


def sun_layer2_kernel(a_ref, h_ref, w2r_ref, w2n_ref, b2_ref, out_ref,
                      *, num_classes, tile_rows):
    """Layer 2 + masked log_softmax for one row tile."""
    i = pl.program_id(0)

    a = a_ref[...].astype(jnp.bfloat16)

    # Local aggregation at width Hp, then project to classes.  (Re-associating
    # as A @ (h @ w2n) only pays off when Hp > Cp; here both pad to 128.)
    local = jnp.dot(a, h_ref[...], preferred_element_type=jnp.float32)
    nonroot = jnp.dot(local.astype(jnp.bfloat16), w2n_ref[...],
                      preferred_element_type=jnp.float32)

    start = pl.multiple_of(i * tile_rows, tile_rows)
    h_tile = h_ref[pl.ds(start, tile_rows), :]
    root = jnp.dot(h_tile, w2r_ref[...], preferred_element_type=jnp.float32)

    logits = nonroot + root + b2_ref[...]

    # Mask the lane padding (classes >= num_classes) out of the softmax.
    col = jax.lax.broadcasted_iota(jnp.int32, logits.shape, 1)
    logits = jnp.where(col < num_classes, logits, jnp.float32(-1e30))

    m = jnp.max(logits, axis=1, keepdims=True)
    s = logits - m
    lse = jnp.log(jnp.sum(jnp.exp(s), axis=1, keepdims=True))
    out_ref[...] = s - lse


def sun_forward(x, edge_index, params, *, tile_m=256):
    """x: [N, F] f32, edge_index: [2, E] int32, params: weights [in,out], biases [1,out]."""
    N, F = x.shape
    H = params["w1r"].shape[1]
    C = params["w2r"].shape[1]

    # Tile rows: multiple of 32 (int8 A sublane packing); cap so the double-
    # buffered int8 A row tile stays within ~24 MiB of VMEM (v7x headroom),
    # while v5e/v6e comfortably take the larger default.
    est_np = _round_up(N, 256)
    tm_cap = max(32, (24 * 1024 * 1024) // (2 * est_np) // 32 * 32)
    TM = max(32, min(int(tile_m), tm_cap))
    if N < TM:
        TM = _round_up(max(N, 1), 32)

    Np = _round_up(N, TM)
    Fp = _round_up(F, 128)
    Hp = _round_up(H, 128)
    Cp = _round_up(C, 128)
    num_tiles = Np // TM

    def pad2(w, rows, cols):
        return jnp.zeros((rows, cols), jnp.float32).at[:w.shape[0], :w.shape[1]].set(w)

    # Dense adjacency (to_dense_adj) built directly in int8 edge counts; no f32
    # N^2 intermediate.  Exact for edge multiplicities <= 127.
    ones = jnp.ones((edge_index.shape[1],), jnp.int8)
    A = jnp.zeros((Np, Np), jnp.int8).at[edge_index[0], edge_index[1]].add(ones)

    x_bf = pad2(x, Np, Fp).astype(jnp.bfloat16)

    W1r = pad2(params["w1r"], Fp, Hp).astype(jnp.bfloat16)
    W1n = pad2(params["w1n"], Fp, Hp).astype(jnp.bfloat16)
    W2r = pad2(params["w2r"], Hp, Cp).astype(jnp.bfloat16)
    W2n = pad2(params["w2n"], Hp, Cp).astype(jnp.bfloat16)
    w2g = pad2(params["w2g"], Hp, Cp)  # f32, used only in the tiny glue below

    # Grid-invariant global branch of layer 1 + all three biases -> one f32 row.
    mean_x = jnp.mean(x, axis=0, keepdims=True)
    bias1 = pad2(params["b1r"] + params["b1n"] + params["b1g"]
                 + mean_x @ params["w1g"], 1, Hp)

    grid = (num_tiles,)
    cparams = pltpu.CompilerParams(
        dimension_semantics=("parallel",),   # v7x megacore: row tiles across TCs
        vmem_limit_bytes=48 * 1024 * 1024,   # headroom under v7x 64 MiB physical
    )
    single = pl.Buffered(1)  # grid-invariant operands: no wasted double buffer

    h, hsum = pl.pallas_call(
        functools.partial(sun_layer1_kernel, num_nodes=N, tile_rows=TM),
        grid=grid,
        in_specs=[
            pl.BlockSpec((TM, Np), lambda i: (i, 0)),                        # A rows (int8)
            pl.BlockSpec((Np, Fp), lambda i: (0, 0), pipeline_mode=single),  # x full
            pl.BlockSpec((Fp, Hp), lambda i: (0, 0), pipeline_mode=single),  # w1r
            pl.BlockSpec((Fp, Hp), lambda i: (0, 0), pipeline_mode=single),  # w1n
            pl.BlockSpec((1, Hp), lambda i: (0, 0), pipeline_mode=single),   # folded bias1
        ],
        out_specs=[
            pl.BlockSpec((TM, Hp), lambda i: (i, 0)),
            pl.BlockSpec((8, Hp), lambda i: (i, 0)),
        ],
        out_shape=[
            jax.ShapeDtypeStruct((Np, Hp), jnp.bfloat16),            # h = relu(layer1)
            jax.ShapeDtypeStruct((8 * num_tiles, Hp), jnp.float32),  # per-tile col sums
        ],
        compiler_params=cparams,
    )(A, x_bf, W1r, W1n, bias1)

    # Tiny grid-invariant glue: layer-2 global branch from the f32 column sums
    # (each tile's sum was replicated across 8 sublanes, hence the /8).
    mean_h = jnp.sum(hsum, axis=0, keepdims=True) / (8.0 * N)
    bias2 = pad2(params["b2r"] + params["b2n"] + params["b2g"], 1, Cp) + mean_h @ w2g

    out_padded = pl.pallas_call(
        functools.partial(sun_layer2_kernel, num_classes=C, tile_rows=TM),
        grid=grid,
        in_specs=[
            pl.BlockSpec((TM, Np), lambda i: (i, 0)),                        # A rows (int8)
            pl.BlockSpec((Np, Hp), lambda i: (0, 0), pipeline_mode=single),  # h full
            pl.BlockSpec((Hp, Cp), lambda i: (0, 0), pipeline_mode=single),  # w2r
            pl.BlockSpec((Hp, Cp), lambda i: (0, 0), pipeline_mode=single),  # w2n
            pl.BlockSpec((1, Cp), lambda i: (0, 0), pipeline_mode=single),   # folded bias2
        ],
        out_specs=pl.BlockSpec((TM, Cp), lambda i: (i, 0)),
        out_shape=jax.ShapeDtypeStruct((Np, Cp), jnp.float32),
        compiler_params=cparams,
    )(A, h, W2r, W2n, bias2)

    return out_padded[:N, :C]


def make_params(key, num_features, hidden_channels, num_classes):
    """Deterministic init. Weights stored [in, out]; biases stored [1, out]."""
    keys = jax.random.split(key, 12)

    def lin(kw, kb, fan_in, fan_out):
        scale = 1.0 / np.sqrt(fan_in)
        w = jax.random.uniform(kw, (fan_in, fan_out), jnp.float32, -scale, scale)
        b = jax.random.uniform(kb, (1, fan_out), jnp.float32, -scale, scale)
        return w, b

    p = {}
    p["w1r"], p["b1r"] = lin(keys[0], keys[1], num_features, hidden_channels)
    p["w1n"], p["b1n"] = lin(keys[2], keys[3], num_features, hidden_channels)
    p["w1g"], p["b1g"] = lin(keys[4], keys[5], num_features, hidden_channels)
    p["w2r"], p["b2r"] = lin(keys[6], keys[7], hidden_channels, num_classes)
    p["w2n"], p["b2n"] = lin(keys[8], keys[9], hidden_channels, num_classes)
    p["w2g"], p["b2g"] = lin(keys[10], keys[11], hidden_channels, num_classes)
    return p


def sun_reference(x, edge_index, params):
    """Pure-JAX f32 reference mirroring the PyTorch forward (mask all True)."""
    N = x.shape[0]
    A = jnp.zeros((N, N), jnp.float32).at[edge_index[0], edge_index[1]].add(1.0)

    def layer(xin, wr, br, wn, bn, wg, bg):
        local = A @ xin
        glob = jnp.mean(xin, axis=0, keepdims=True) @ wg + bg
        root = xin @ wr + br
        nonroot = local @ wn + bn
        return root + nonroot + glob

    h = layer(x, params["w1r"], params["b1r"], params["w1n"], params["b1n"],
              params["w1g"], params["b1g"])
    h = jnp.maximum(h, 0.0)
    logits = layer(h, params["w2r"], params["b2r"], params["w2n"], params["b2n"],
                   params["w2g"], params["b2g"])
    return jax.nn.log_softmax(logits, axis=1)


if __name__ == "__main__":
    num_nodes = 8
    num_features = 16
    hidden_channels = 32
    num_classes = 8

    key = jax.random.PRNGKey(0)
    k_x, k_e, k_p = jax.random.split(key, 3)

    x = jax.random.normal(k_x, (num_nodes, num_features), jnp.float32)
    edge_index = jax.random.randint(k_e, (2, 16), 0, num_nodes, jnp.int32)
    params = make_params(k_p, num_features, hidden_channels, num_classes)

    out = jax.jit(sun_forward)(x, edge_index, params)
    out = jax.block_until_ready(out)

    # Kernel runs matmuls in bf16 (f32 accumulation); reference is pure f32,
    # hence the relaxed tolerance.
    ref = sun_reference(x, edge_index, params)
    np.testing.assert_allclose(np.asarray(out), np.asarray(ref), rtol=5e-2, atol=5e-2)

    print("KERNEL_OK")
</pallas_src>

<mosaic_0001>
module attributes {stable_mosaic.version = 11 : i64} {
  func.func @sun_layer1_kernel(%arg0: i32, %arg1: memref<32x32xi8, #tpu.memory_space<vmem>>, %arg2: memref<32x128xbf16, #tpu.memory_space<vmem>>, %arg3: memref<128x128xbf16, #tpu.memory_space<vmem>>, %arg4: memref<128x128xbf16, #tpu.memory_space<vmem>>, %arg5: memref<1x128xf32, #tpu.memory_space<vmem>>, %arg6: memref<32x128xbf16, #tpu.memory_space<vmem>>, %arg7: memref<8x128xf32, #tpu.memory_space<vmem>>) attributes {dimension_semantics = [#tpu.dimension_semantics<parallel>], iteration_bounds = array<i64: 1>, scalar_prefetch = 0 : i64, scratch_operands = 0 : i64, tpu.core_type = #tpu.core_type<tc>, window_params = [{transform_indices = @transform_0, window_bounds = array<i64: 32, 32>}, {pipeline_mode = #tpu.pipeline_mode<synchronous>, transform_indices = @transform_1, window_bounds = array<i64: 32, 128>}, {pipeline_mode = #tpu.pipeline_mode<synchronous>, transform_indices = @transform_2, window_bounds = array<i64: 128, 128>}, {pipeline_mode = #tpu.pipeline_mode<synchronous>, transform_indices = @transform_3, window_bounds = array<i64: 128, 128>}, {pipeline_mode = #tpu.pipeline_mode<synchronous>, transform_indices = @transform_4, window_bounds = array<i64: 1, 128>}, {transform_indices = @transform_5, window_bounds = array<i64: 32, 128>}, {transform_indices = @transform_6, window_bounds = array<i64: 8, 128>}]} {
    %c0 = arith.constant 0 : index
    %c0_0 = arith.constant 0 : index
    %0 = vector.load %arg1[%c0, %c0_0] : memref<32x32xi8, #tpu.memory_space<vmem>>, vector<32x32xi8>
    %1 = arith.sitofp %0 : vector<32x32xi8> to vector<32x32xbf16>
    %c0_1 = arith.constant 0 : index
    %c0_2 = arith.constant 0 : index
    %2 = vector.load %arg2[%c0_1, %c0_2] : memref<32x128xbf16, #tpu.memory_space<vmem>>, vector<32x128xbf16>
    %cst = arith.constant dense<0.000000e+00> : vector<32x128xf32>
    %3 = tpu.matmul %1, %2, %cst {dimension_numbers = #tpu.dot_dimension_numbers<[1], [0], [0], [1], [0, 0, 1, 1], [], []>} : vector<32x32xbf16>, vector<32x128xbf16>, vector<32x128xf32> -> vector<32x128xf32>
    %c32_i32 = arith.constant 32 : i32
    %4 = arith.muli %arg0, %c32_i32 : i32
    %5 = tpu.assume_multiple %4, 32 : i32
    %6 = arith.index_cast %5 : i32 to index
    %c0_3 = arith.constant 0 : index
    %7 = vector.load %arg2[%6, %c0_3] : memref<32x128xbf16, #tpu.memory_space<vmem>>, vector<32x128xbf16>
    %c0_4 = arith.constant 0 : index
    %c0_5 = arith.constant 0 : index
    %8 = vector.load %arg3[%c0_4, %c0_5] : memref<128x128xbf16, #tpu.memory_space<vmem>>, vector<128x128xbf16>
    %cst_6 = arith.constant dense<0.000000e+00> : vector<32x128xf32>
    %9 = tpu.matmul %7, %8, %cst_6 {dimension_numbers = #tpu.dot_dimension_numbers<[1], [0], [0], [1], [0, 0, 1, 1], [], []>} : vector<32x128xbf16>, vector<128x128xbf16>, vector<32x128xf32> -> vector<32x128xf32>
    %10 = arith.truncf %3 : vector<32x128xf32> to vector<32x128xbf16>
    %c0_7 = arith.constant 0 : index
    %c0_8 = arith.constant 0 : index
    %11 = vector.load %arg4[%c0_7, %c0_8] : memref<128x128xbf16, #tpu.memory_space<vmem>>, vector<128x128xbf16>
    %cst_9 = arith.constant dense<0.000000e+00> : vector<32x128xf32>
    %12 = tpu.matmul %10, %11, %cst_9 {dimension_numbers = #tpu.dot_dimension_numbers<[1], [0], [0], [1], [0, 0, 1, 1], [], []>} : vector<32x128xbf16>, vector<128x128xbf16>, vector<32x128xf32> -> vector<32x128xf32>
    %13 = arith.addf %9, %12 : vector<32x128xf32>
    %c0_10 = arith.constant 0 : index
    %c0_11 = arith.constant 0 : index
    %14 = vector.load %arg5[%c0_10, %c0_11] : memref<1x128xf32, #tpu.memory_space<vmem>>, vector<1x128xf32>
    %15 = vector.broadcast %14 : vector<1x128xf32> to vector<32x128xf32>
    %16 = arith.addf %13, %15 : vector<32x128xf32>
    %cst_12 = arith.constant 0.000000e+00 : f32
    %17 = vector.broadcast %cst_12 : f32 to vector<32x128xf32>
    %18 = arith.maximumf %16, %17 : vector<32x128xf32>
    %c0_i32 = arith.constant 0 : i32
    %19 = arith.cmpi eq, %arg0, %c0_i32 : i32
    %20 = arith.extui %19 : i1 to i32
    %c0_i32_13 = arith.constant 0 : i32
    %21 = arith.cmpi ne, %20, %c0_i32_13 : i32
    scf.if %21 {
      %c32_i32_15 = arith.constant 32 : i32
      %25 = arith.muli %arg0, %c32_i32_15 : i32
      %26 = tpu.iota {dimensions = array<i32: 0>} : vector<32x128xi32>
      %27 = vector.broadcast %25 : i32 to vector<32x128xi32>
      %28 = arith.addi %27, %26 : vector<32x128xi32>
      %c8_i32 = arith.constant 8 : i32
      %29 = vector.broadcast %c8_i32 : i32 to vector<32x128xi32>
      %30 = arith.cmpi slt, %28, %29 : vector<32x128xi32>
      %cst_16 = arith.constant 0.000000e+00 : f32
      %31 = vector.broadcast %cst_16 : f32 to vector<32x128xf32>
      %32 = arith.select %30, %18, %31 : vector<32x128xi1>, vector<32x128xf32>
      %33 = arith.truncf %32 : vector<32x128xf32> to vector<32x128xbf16>
      %c0_17 = arith.constant 0 : index
      %c0_18 = arith.constant 0 : index
      %34 = vector.load %arg6[%c0_17, %c0_18] : memref<32x128xbf16, #tpu.memory_space<vmem>>, vector<32x128xbf16>
      tpu.vector_store %arg6[%c0_17, %c0_18], %33 {strides = array<i32>} : memref<32x128xbf16, #tpu.memory_space<vmem>>, vector<32x128xbf16>,
      %cst_19 = arith.constant dense<0.000000e+00> : vector<128xf32>
      %35 = vector.multi_reduction <add>, %32, %cst_19 [0] : vector<32x128xf32> to vector<128xf32>
      %36 = vector.shape_cast %35 : vector<128xf32> to vector<1x128xf32>
      %37 = vector.shape_cast %36 : vector<1x128xf32> to vector<1x128xf32>
      %38 = vector.broadcast %37 : vector<1x128xf32> to vector<8x128xf32>
      %c0_20 = arith.constant 0 : index
      %c0_21 = arith.constant 0 : index
      %39 = vector.load %arg7[%c0_20, %c0_21] : memref<8x128xf32, #tpu.memory_space<vmem>>, vector<8x128xf32>
      tpu.vector_store %arg7[%c0_20, %c0_21], %38 {strides = array<i32>} : memref<8x128xf32, #tpu.memory_space<vmem>>, vector<8x128xf32>,
    } else {
    }
    %true = arith.constant true
    %22 = arith.xori %19, %true : i1
    %23 = arith.extui %22 : i1 to i32
    %c0_i32_14 = arith.constant 0 : i32
    %24 = arith.cmpi ne, %23, %c0_i32_14 : i32
    scf.if %24 {
      %25 = arith.truncf %18 : vector<32x128xf32> to vector<32x128xbf16>
      %c0_15 = arith.constant 0 : index
      %c0_16 = arith.constant 0 : index
      %26 = vector.load %arg6[%c0_15, %c0_16] : memref<32x128xbf16, #tpu.memory_space<vmem>>, vector<32x128xbf16>
      tpu.vector_store %arg6[%c0_15, %c0_16], %25 {strides = array<i32>} : memref<32x128xbf16, #tpu.memory_space<vmem>>, vector<32x128xbf16>,
      %cst_17 = arith.constant dense<0.000000e+00> : vector<128xf32>
      %27 = vector.multi_reduction <add>, %18, %cst_17 [0] : vector<32x128xf32> to vector<128xf32>
      %28 = vector.shape_cast %27 : vector<128xf32> to vector<1x128xf32>
      %29 = vector.shape_cast %28 : vector<1x128xf32> to vector<1x128xf32>
      %30 = vector.broadcast %29 : vector<1x128xf32> to vector<8x128xf32>
      %c0_18 = arith.constant 0 : index
      %c0_19 = arith.constant 0 : index
      %31 = vector.load %arg7[%c0_18, %c0_19] : memref<8x128xf32, #tpu.memory_space<vmem>>, vector<8x128xf32>
      tpu.vector_store %arg7[%c0_18, %c0_19], %30 {strides = array<i32>} : memref<8x128xf32, #tpu.memory_space<vmem>>, vector<8x128xf32>,
    } else {
    }
    return
  }
  func.func @transform_0(%arg0: i32) -> (i32, i32) {
    %c0_i32 = arith.constant 0 : i32
    %c0_i32_0 = arith.constant 0 : i32
    return %arg0, %c0_i32 : i32, i32
  }
  func.func @transform_1(%arg0: i32) -> (i32, i32) {
    %c0_i32 = arith.constant 0 : i32
    %c0_i32_0 = arith.constant 0 : i32
    %c0_i32_1 = arith.constant 0 : i32
    return %c0_i32, %c0_i32_0 : i32, i32
  }
  func.func @transform_2(%arg0: i32) -> (i32, i32) {
    %c0_i32 = arith.constant 0 : i32
    %c0_i32_0 = arith.constant 0 : i32
    %c0_i32_1 = arith.constant 0 : i32
    return %c0_i32, %c0_i32_0 : i32, i32
  }
  func.func @transform_3(%arg0: i32) -> (i32, i32) {
    %c0_i32 = arith.constant 0 : i32
    %c0_i32_0 = arith.constant 0 : i32
    %c0_i32_1 = arith.constant 0 : i32
    return %c0_i32, %c0_i32_0 : i32, i32
  }
  func.func @transform_4(%arg0: i32) -> (i32, i32) {
    %c0_i32 = arith.constant 0 : i32
    %c0_i32_0 = arith.constant 0 : i32
    %c0_i32_1 = arith.constant 0 : i32
    return %c0_i32, %c0_i32_0 : i32, i32
  }
  func.func @transform_5(%arg0: i32) -> (i32, i32) {
    %c0_i32 = arith.constant 0 : i32
    %c0_i32_0 = arith.constant 0 : i32
    return %arg0, %c0_i32 : i32, i32
  }
  func.func @transform_6(%arg0: i32) -> (i32, i32) {
    %c0_i32 = arith.constant 0 : i32
    %c0_i32_0 = arith.constant 0 : i32
    return %arg0, %c0_i32 : i32, i32
  }
}

module attributes {stable_mosaic.version = 11 : i64} {
  func.func @sun_layer2_kernel(%arg0: i32, %arg1: memref<32x32xi8, #tpu.memory_space<vmem>>, %arg2: memref<32x128xbf16, #tpu.memory_space<vmem>>, %arg3: memref<128x128xbf16, #tpu.memory_space<vmem>>, %arg4: memref<128x128xbf16, #tpu.memory_space<vmem>>, %arg5: memref<1x128xf32, #tpu.memory_space<vmem>>, %arg6: memref<32x128xf32, #tpu.memory_space<vmem>>) attributes {dimension_semantics = [#tpu.dimension_semantics<parallel>], iteration_bounds = array<i64: 1>, scalar_prefetch = 0 : i64, scratch_operands = 0 : i64, tpu.core_type = #tpu.core_type<tc>, window_params = [{transform_indices = @transform_0, window_bounds = array<i64: 32, 32>}, {pipeline_mode = #tpu.pipeline_mode<synchronous>, transform_indices = @transform_1, window_bounds = array<i64: 32, 128>}, {pipeline_mode = #tpu.pipeline_mode<synchronous>, transform_indices = @transform_2, window_bounds = array<i64: 128, 128>}, {pipeline_mode = #tpu.pipeline_mode<synchronous>, transform_indices = @transform_3, window_bounds = array<i64: 128, 128>}, {pipeline_mode = #tpu.pipeline_mode<synchronous>, transform_indices = @transform_4, window_bounds = array<i64: 1, 128>}, {transform_indices = @transform_5, window_bounds = array<i64: 32, 128>}]} {
    %c0 = arith.constant 0 : index
    %c0_0 = arith.constant 0 : index
    %0 = vector.load %arg1[%c0, %c0_0] : memref<32x32xi8, #tpu.memory_space<vmem>>, vector<32x32xi8>
    %1 = arith.sitofp %0 : vector<32x32xi8> to vector<32x32xbf16>
    %c0_1 = arith.constant 0 : index
    %c0_2 = arith.constant 0 : index
    %2 = vector.load %arg2[%c0_1, %c0_2] : memref<32x128xbf16, #tpu.memory_space<vmem>>, vector<32x128xbf16>
    %cst = arith.constant dense<0.000000e+00> : vector<32x128xf32>
    %3 = tpu.matmul %1, %2, %cst {dimension_numbers = #tpu.dot_dimension_numbers<[1], [0], [0], [1], [0, 0, 1, 1], [], []>} : vector<32x32xbf16>, vector<32x128xbf16>, vector<32x128xf32> -> vector<32x128xf32>
    %4 = arith.truncf %3 : vector<32x128xf32> to vector<32x128xbf16>
    %c0_3 = arith.constant 0 : index
    %c0_4 = arith.constant 0 : index
    %5 = vector.load %arg4[%c0_3, %c0_4] : memref<128x128xbf16, #tpu.memory_space<vmem>>, vector<128x128xbf16>
    %cst_5 = arith.constant dense<0.000000e+00> : vector<32x128xf32>
    %6 = tpu.matmul %4, %5, %cst_5 {dimension_numbers = #tpu.dot_dimension_numbers<[1], [0], [0], [1], [0, 0, 1, 1], [], []>} : vector<32x128xbf16>, vector<128x128xbf16>, vector<32x128xf32> -> vector<32x128xf32>
    %c32_i32 = arith.constant 32 : i32
    %7 = arith.muli %arg0, %c32_i32 : i32
    %8 = tpu.assume_multiple %7, 32 : i32
    %9 = arith.index_cast %8 : i32 to index
    %c0_6 = arith.constant 0 : index
    %10 = vector.load %arg2[%9, %c0_6] : memref<32x128xbf16, #tpu.memory_space<vmem>>, vector<32x128xbf16>
    %c0_7 = arith.constant 0 : index
    %c0_8 = arith.constant 0 : index
    %11 = vector.load %arg3[%c0_7, %c0_8] : memref<128x128xbf16, #tpu.memory_space<vmem>>, vector<128x128xbf16>
    %cst_9 = arith.constant dense<0.000000e+00> : vector<32x128xf32>
    %12 = tpu.matmul %10, %11, %cst_9 {dimension_numbers = #tpu.dot_dimension_numbers<[1], [0], [0], [1], [0, 0, 1, 1], [], []>} : vector<32x128xbf16>, vector<128x128xbf16>, vector<32x128xf32> -> vector<32x128xf32>
    %13 = arith.addf %6, %12 : vector<32x128xf32>
    %c0_10 = arith.constant 0 : index
    %c0_11 = arith.constant 0 : index
    %14 = vector.load %arg5[%c0_10, %c0_11] : memref<1x128xf32, #tpu.memory_space<vmem>>, vector<1x128xf32>
    %15 = vector.broadcast %14 : vector<1x128xf32> to vector<32x128xf32>
    %16 = arith.addf %13, %15 : vector<32x128xf32>
    %17 = tpu.iota {dimensions = array<i32: 1>} : vector<32x128xi32>
    %c8_i32 = arith.constant 8 : i32
    %18 = vector.broadcast %c8_i32 : i32 to vector<32x128xi32>
    %19 = arith.cmpi slt, %17, %18 : vector<32x128xi32>
    %cst_12 = arith.constant -1.000000e+30 : f32
    %20 = vector.broadcast %cst_12 : f32 to vector<32x128xf32>
    %21 = arith.select %19, %16, %20 : vector<32x128xi1>, vector<32x128xf32>
    %cst_13 = arith.constant dense<0xFF800000> : vector<32xf32>
    %22 = vector.multi_reduction <maximumf>, %21, %cst_13 [1] : vector<32x128xf32> to vector<32xf32>
    %23 = vector.shape_cast %22 : vector<32xf32> to vector<32x1xf32>
    %24 = vector.broadcast %23 : vector<32x1xf32> to vector<32x128xf32>
    %25 = arith.subf %21, %24 : vector<32x128xf32>
    %26 = math.exp %25 : vector<32x128xf32>
    %cst_14 = arith.constant dense<0.000000e+00> : vector<32xf32>
    %27 = vector.multi_reduction <add>, %26, %cst_14 [1] : vector<32x128xf32> to vector<32xf32>
    %28 = vector.shape_cast %27 : vector<32xf32> to vector<32x1xf32>
    %29 = math.log %28 : vector<32x1xf32>
    %30 = vector.broadcast %29 : vector<32x1xf32> to vector<32x128xf32>
    %31 = arith.subf %25, %30 : vector<32x128xf32>
    %c0_15 = arith.constant 0 : index
    %c0_16 = arith.constant 0 : index
    %32 = vector.load %arg6[%c0_15, %c0_16] : memref<32x128xf32, #tpu.memory_space<vmem>>, vector<32x128xf32>
    tpu.vector_store %arg6[%c0_15, %c0_16], %31 {strides = array<i32>} : memref<32x128xf32, #tpu.memory_space<vmem>>, vector<32x128xf32>,
    return
  }
  func.func @transform_0(%arg0: i32) -> (i32, i32) {
    %c0_i32 = arith.constant 0 : i32
    %c0_i32_0 = arith.constant 0 : i32
    return %arg0, %c0_i32 : i32, i32
  }
  func.func @transform_1(%arg0: i32) -> (i32, i32) {
    %c0_i32 = arith.constant 0 : i32
    %c0_i32_0 = arith.constant 0 : i32
    %c0_i32_1 = arith.constant 0 : i32
    return %c0_i32, %c0_i32_0 : i32, i32
  }
  func.func @transform_2(%arg0: i32) -> (i32, i32) {
    %c0_i32 = arith.constant 0 : i32
    %c0_i32_0 = arith.constant 0 : i32
    %c0_i32_1 = arith.constant 0 : i32
    return %c0_i32, %c0_i32_0 : i32, i32
  }
  func.func @transform_3(%arg0: i32) -> (i32, i32) {
    %c0_i32 = arith.constant 0 : i32
    %c0_i32_0 = arith.constant 0 : i32
    %c0_i32_1 = arith.constant 0 : i32
    return %c0_i32, %c0_i32_0 : i32, i32
  }
  func.func @transform_4(%arg0: i32) -> (i32, i32) {
    %c0_i32 = arith.constant 0 : i32
    %c0_i32_0 = arith.constant 0 : i32
    %c0_i32_1 = arith.constant 0 : i32
    return %c0_i32, %c0_i32_0 : i32, i32
  }
  func.func @transform_5(%arg0: i32) -> (i32, i32) {
    %c0_i32 = arith.constant 0 : i32
    %c0_i32_0 = arith.constant 0 : i32
    return %arg0, %c0_i32 : i32, i32
  }
}

</mosaic_0001>

<llo_original>
// kernel: sun_forward.2
$region0: #{sun_forward.2}
  #allocation0 [shape = 'u32[]', space=smem, size = 0x4, offset = 0x4, fixed_abs, tag = 'smem constant byte address 0x4 - core index']
  #allocation1 [shape = 'u32[144,128]{1,0:T(1,128)}', space=vmem, size = 0x12000, scoped, tag = 'internal scratch']
  %s0 = inlined_call_operand.vmem [shape: s8[32,32], index: 0, kind: input, shape index: {}]
  %s1 = inlined_call_operand.vmem [shape: bf16[32,128], index: 1, kind: input, shape index: {}]
  %s2 = inlined_call_operand.vmem [shape: bf16[128,128], index: 2, kind: input, shape index: {}]
  %s3 = inlined_call_operand.vmem [shape: bf16[128,128], index: 3, kind: input, shape index: {}]
  %s4 = inlined_call_operand.vmem [shape: f32[1,128], index: 4, kind: input, shape index: {}]
  %s5 = inlined_call_operand.vmem [shape: bf16[32,128], index: 5, kind: output, shape index: {0}]
  %s6 = inlined_call_operand.vmem [shape: f32[8,128], index: 6, kind: output, shape index: {1}]
  %7 = xla_tuple %s5, %s6
  %s8 = sld [smem:[#allocation0]]
  $region46: #{sun_forward.2} parent=0
    _
  %s10 = ssub.s32 1, %s8
  %s11 = scalar_select 0, %s10, %s8
  // Predicated region
  $region2: #{sun_forward.2} parent=0 // pred_check
    _
  $region3: #{sun_forward.2} parent=0 // pred_check_branch
    %13 = sbr.rel (0) target = $region5
  $region4: #{sun_forward.2} parent=0 // pred_region
    _
  $region5: #{sun_forward.2} parent=0 // pred_fallthru
    _
  // Predicated region
  $region6: #{sun_forward.2} parent=0 // pred_check
    _
  $region7: #{sun_forward.2} parent=0 // pred_check_branch
    %15 = sbr.rel (0) target = $region9
  $region8: #{sun_forward.2} parent=0 // pred_region
    _
  $region9: #{sun_forward.2} parent=0 // pred_fallthru
    _
  // Predicated region
  $region10: #{sun_forward.2} parent=0 // pred_check
    _
  $region11: #{sun_forward.2} parent=0 // pred_check_branch
    %17 = sbr.rel (0) target = $region13
  $region12: #{sun_forward.2} parent=0 // pred_region
    _
  $region13: #{sun_forward.2} parent=0 // pred_fallthru
    _
  // Predicated region
  $region14: #{sun_forward.2} parent=0 // pred_check
    _
  $region15: #{sun_forward.2} parent=0 // pred_check_branch
    %19 = sbr.rel (0) target = $region17
  $region16: #{sun_forward.2} parent=0 // pred_region
    _
  $region17: #{sun_forward.2} parent=0 // pred_fallthru
    _
  // Predicated region
  $region18: #{sun_forward.2} parent=0 // pred_check
    _
  $region19: #{sun_forward.2} parent=0 // pred_check_branch
    %21 = sbr.rel (0) target = $region21
  $region20: #{sun_forward.2} parent=0 // pred_region
    _
  $region21: #{sun_forward.2} parent=0 // pred_fallthru
    _
  %v23 = vld [vmem:[%s0] sm:$0x3]
  %v24 = vld [vmem:[%s0 + $0x2] sm:$0x3]
  %v25 = vld [vmem:[%s0 + $0x4] sm:$0x3]
  %v26 = vld [vmem:[%s0 + $0x6] sm:$0x3]
  %v27 = vunpack.c.l.s8.bf16 %v23
  %v28 = vunpack.c.l.s8.bf16 %v24
  %v29 = vunpack.c.l.s8.bf16 %v25
  %v30 = vunpack.c.l.s8.bf16 %v26
  %v31 = vld [vmem:[%s1] sm:$0xf]
  %v32 = vld [vmem:[%s1 + $0x4] sm:$0xf]
  %v33 = vld [vmem:[%s1 + $0x8] sm:$0xf]
  %v34 = vld [vmem:[%s1 + $0xc] sm:$0xf]
  %v39 = vunpack.c.l.b16 %v27
  %v40 = vunpack.c.l.b16 %v28
  %v41 = vunpack.c.l.b16 %v29
  %v42 = vunpack.c.l.b16 %v30
  %v43 = vpack.c.b16 %v40, %v39
  %v44 = vpack.c.b16 %v42, %v41
  %v49 = vunpack.c.l.b16 %v31
  %v50 = vunpack.c.l.b16 %v32
  %v51 = vunpack.c.l.b16 %v33
  %v52 = vunpack.c.l.b16 %v34
  %v53 = vpack.c.b16 %v50, %v49
  %v54 = vpack.c.b16 %v52, %v51
  %vm57 = vcmask 261120
  %v59 = vsel %vm57, %v43, 0
  %v62 = vsel %vm57, %v44, 0
  %64 = vmatprep.subr.bf16.mxu0 0
  %65 = vmatpush1.bf16.msra.mxu0 %v53
  %66 = vmatprep.subr.bf16.mxu0 0
  %67 = vmatpush1.bf16.msra.mxu0 %v54
  %68 = vmatprep.subr.bf16.mxu0 0
  %69 = vmatpush1.bf16.msra.mxu0 0
  %70 = vmatprep.subr.bf16.mxu0 0
  %71 = vmatpush1.bf16.msra.mxu0 0
  %72 = vmatprep.subr.bf16.mxu0 0
  %73 = vmatpush1.bf16.msra.mxu0 0
  %74 = vmatprep.subr.bf16.mxu0 0
  %75 = vmatpush1.bf16.msra.mxu0 0
  %76 = vmatprep.subr.bf16.mxu0 0
  %77 = vmatpush1.bf16.msra.mxu0 0
  %78 = vmatprep.subr.bf16.mxu0 0
  %79 = vmatpush1.bf16.msra.mxu0 0
  %80 = vmatprep.subr.bf16.mxu0 0
  %81 = vmatpush1.bf16.msra.mxu0 0
  %82 = vmatprep.subr.bf16.mxu0 0
  %83 = vmatpush1.bf16.msra.mxu0 0
  %84 = vmatprep.subr.bf16.mxu0 0
  %85 = vmatpush1.bf16.msra.mxu0 0
  %86 = vmatprep.subr.bf16.mxu0 0
  %87 = vmatpush1.bf16.msra.mxu0 0
  %88 = vmatprep.subr.bf16.mxu0 0
  %89 = vmatpush1.bf16.msra.mxu0 0
  %90 = vmatprep.subr.bf16.mxu0 0
  %91 = vmatpush1.bf16.msra.mxu0 0
  %92 = vmatprep.subr.bf16.mxu0 0
  %93 = vmatpush1.bf16.msra.mxu0 0
  %94 = vmatprep.subr.bf16.mxu0 0
  %95 = vmatpush1.bf16.msra.mxu0 0
  %96 = vmatprep.mubr.bf16.mxu0 0
  %97 = vmatmul.mubr.bf16.gmra.mrb[0].mxu0 %v59
  %v98 = vpop.f32.mrb[0].mxu0
  %v99 = vadd.f32 0.0, %v98
  %v100 = vpop.f32.mrb[0].mxu0
  %v101 = vpop.f32.mrb[0].mxu0
  %v102 = vadd.f32 0.0, %v101
  %v103 = vpop.f32.mrb[0].mxu0
  %104 = vmatprep.mubr.bf16.mxu0 0
  %105 = vmatmul.mubr.bf16.gmra.mrb[0].mxu0 %v62
  %v106 = vpop.f32.mrb[0].mxu0
  %v107 = vadd.f32 0.0, %v106
  %v108 = vpop.f32.mrb[0].mxu0
  %v109 = vpop.f32.mrb[0].mxu0
  %v110 = vadd.f32 0.0, %v109
  %v111 = vpop.f32.mrb[0].mxu0
  %112 = vdwg.mxu0
  %s113 = smul.u32 0, 32
  %s114 = sshra.s32 %s113, 3
  %s115 = sand.u32 %s113, 7
  %s116 = smul.addr %s114, 4
  %s117 = scalar_lea.vmem %s1, %s116
  %v118 = vld [vmem:[%s117] sm:$0xf]
  %v119 = vld [vmem:[%s117 + $0x4] sm:$0xf]
  %v120 = vld [vmem:[%s117 + $0x8] sm:$0xf]
  %v121 = vld [vmem:[%s117 + $0xc] sm:$0xf]
  %v122 = vld [vmem:[%s2] sm:$0xf]
  %v123 = vld [vmem:[%s2 + $0x4] sm:$0xf]
  %v124 = vld [vmem:[%s2 + $0x8] sm:$0xf]
  %v125 = vld [vmem:[%s2 + $0xc] sm:$0xf]
  %v126 = vld [vmem:[%s2 + $0x10] sm:$0xf]
  %v127 = vld [vmem:[%s2 + $0x14] sm:$0xf]
  %v128 = vld [vmem:[%s2 + $0x18] sm:$0xf]
  %v129 = vld [vmem:[%s2 + $0x1c] sm:$0xf]
  %v130 = vld [vmem:[%s2 + $0x20] sm:$0xf]
  %v131 = vld [vmem:[%s2 + $0x24] sm:$0xf]
  %v132 = vld [vmem:[%s2 + $0x28] sm:$0xf]
  %v133 = vld [vmem:[%s2 + $0x2c] sm:$0xf]
  %v134 = vld [vmem:[%s2 + $0x30] sm:$0xf]
  %v135 = vld [vmem:[%s2 + $0x34] sm:$0xf]
  %v136 = vld [vmem:[%s2 + $0x38] sm:$0xf]
  %v137 = vld [vmem:[%s2 + $0x3c] sm:$0xf]
  %v138 = vpack.c.bf16 %v102, %v99
  %v139 = vpack.c.bf16 %v110, %v107
  %v140 = vld [vmem:[%s3] sm:$0xf]
  %v141 = vld [vmem:[%s3 + $0x4] sm:$0xf]
  %v142 = vld [vmem:[%s3 + $0x8] sm:$0xf]
  %v143 = vld [vmem:[%s3 + $0xc] sm:$0xf]
  %v144 = vld [vmem:[%s3 + $0x10] sm:$0xf]
  %v145 = vld [vmem:[%s3 + $0x14] sm:$0xf]
  %v146 = vld [vmem:[%s3 + $0x18] sm:$0xf]
  %v147 = vld [vmem:[%s3 + $0x1c] sm:$0xf]
  %v148 = vld [vmem:[%s3 + $0x20] sm:$0xf]
  %v149 = vld [vmem:[%s3 + $0x24] sm:$0xf]
  %v150 = vld [vmem:[%s3 + $0x28] sm:$0xf]
  %v151 = vld [vmem:[%s3 + $0x2c] sm:$0xf]
  %v152 = vld [vmem:[%s3 + $0x30] sm:$0xf]
  %v153 = vld [vmem:[%s3 + $0x34] sm:$0xf]
  %v154 = vld [vmem:[%s3 + $0x38] sm:$0xf]
  %v155 = vld [vmem:[%s3 + $0x3c] sm:$0xf]
  %v172 = vunpack.c.l.b16 %v140
  %v173 = vunpack.c.l.b16 %v141
  %v174 = vunpack.c.l.b16 %v142
  %v175 = vunpack.c.l.b16 %v143
  %v176 = vunpack.c.l.b16 %v144
  %v177 = vunpack.c.l.b16 %v145
  %v178 = vunpack.c.l.b16 %v146
  %v179 = vunpack.c.l.b16 %v147
  %v180 = vunpack.c.l.b16 %v148
  %v181 = vunpack.c.l.b16 %v149
  %v182 = vunpack.c.l.b16 %v150
  %v183 = vunpack.c.l.b16 %v151
  %v184 = vunpack.c.l.b16 %v152
  %v185 = vunpack.c.l.b16 %v153
  %v186 = vunpack.c.l.b16 %v154
  %v187 = vunpack.c.l.b16 %v155
  %v188 = vpack.c.b16 %v173, %v172
  %v189 = vpack.c.b16 %v175, %v174
  %v190 = vpack.c.b16 %v177, %v176
  %v191 = vpack.c.b16 %v179, %v178
  %v192 = vpack.c.b16 %v181, %v180
  %v193 = vpack.c.b16 %v183, %v182
  %v194 = vpack.c.b16 %v185, %v184
  %v195 = vpack.c.b16 %v187, %v186
  %204 = vmatprep.subr.bf16.mxu0 0
  %205 = vmatpush1.bf16.msra.mxu0 %v188
  %206 = vmatprep.subr.bf16.mxu0 0
  %207 = vmatpush1.bf16.msra.mxu0 %v189
  %208 = vmatprep.subr.bf16.mxu0 0
  %209 = vmatpush1.bf16.msra.mxu0 %v190
  %210 = vmatprep.subr.bf16.mxu0 0
  %211 = vmatpush1.bf16.msra.mxu0 %v191
  %212 = vmatprep.subr.bf16.mxu0 0
  %213 = vmatpush1.bf16.msra.mxu0 %v192
  %214 = vmatprep.subr.bf16.mxu0 0
  %215 = vmatpush1.bf16.msra.mxu0 %v193
  %216 = vmatprep.subr.bf16.mxu0 0
  %217 = vmatpush1.bf16.msra.mxu0 %v194
  %218 = vmatprep.subr.bf16.mxu0 0
  %219 = vmatpush1.bf16.msra.mxu0 %v195
  %220 = vmatprep.subr.bf16.mxu0 0
  %221 = vmatpush1.bf16.msra.mxu0 0
  %222 = vmatprep.subr.bf16.mxu0 0
  %223 = vmatpush1.bf16.msra.mxu0 0
  %224 = vmatprep.subr.bf16.mxu0 0
  %225 = vmatpush1.bf16.msra.mxu0 0
  %226 = vmatprep.subr.bf16.mxu0 0
  %227 = vmatpush1.bf16.msra.mxu0 0
  %228 = vmatprep.subr.bf16.mxu0 0
  %229 = vmatpush1.bf16.msra.mxu0 0
  %230 = vmatprep.subr.bf16.mxu0 0
  %231 = vmatpush1.bf16.msra.mxu0 0
  %232 = vmatprep.subr.bf16.mxu0 0
  %233 = vmatpush1.bf16.msra.mxu0 0
  %234 = vmatprep.subr.bf16.mxu0 0
  %235 = vmatpush1.bf16.msra.mxu0 0
  %236 = vmatprep.mubr.bf16.mxu0 0
  %237 = vmatmul.mubr.bf16.gmra.mrb[0].mxu0 %v138
  %v238 = vpop.f32.mrb[0].mxu0
  %v239 = vadd.f32 0.0, %v238
  %v240 = vpop.f32.mrb[0].mxu0
  %v241 = vpop.f32.mrb[0].mxu0
  %v242 = vadd.f32 0.0, %v241
  %v243 = vpop.f32.mrb[0].mxu0
  %244 = vmatprep.mubr.bf16.mxu0 0
  %245 = vmatmul.mubr.bf16.gmra.mrb[0].mxu0 %v139
  %v246 = vpop.f32.mrb[0].mxu0
  %v247 = vadd.f32 0.0, %v246
  %v248 = vpop.f32.mrb[0].mxu0
  %v249 = vpop.f32.mrb[0].mxu0
  %v250 = vadd.f32 0.0, %v249
  %v251 = vpop.f32.mrb[0].mxu0
  %252 = vdwg.mxu0
  %v257 = vunpack.c.l.b16 %v118
  %v258 = vunpack.c.l.b16 %v119
  %v259 = vunpack.c.l.b16 %v120
  %v260 = vunpack.c.l.b16 %v121
  %v261 = vpack.c.b16 %v258, %v257
  %v262 = vpack.c.b16 %v260, %v259
  %v281 = vunpack.c.l.b16 %v122
  %v282 = vunpack.c.l.b16 %v123
  %v283 = vunpack.c.l.b16 %v124
  %v284 = vunpack.c.l.b16 %v125
  %v285 = vunpack.c.l.b16 %v126
  %v286 = vunpack.c.l.b16 %v127
  %v287 = vunpack.c.l.b16 %v128
  %v288 = vunpack.c.l.b16 %v129
  %v289 = vunpack.c.l.b16 %v130
  %v290 = vunpack.c.l.b16 %v131
  %v291 = vunpack.c.l.b16 %v132
  %v292 = vunpack.c.l.b16 %v133
  %v293 = vunpack.c.l.b16 %v134
  %v294 = vunpack.c.l.b16 %v135
  %v295 = vunpack.c.l.b16 %v136
  %v296 = vunpack.c.l.b16 %v137
  %v297 = vpack.c.b16 %v282, %v281
  %v298 = vpack.c.b16 %v284, %v283
  %v299 = vpack.c.b16 %v286, %v285
  %v300 = vpack.c.b16 %v288, %v287
  %v301 = vpack.c.b16 %v290, %v289
  %v302 = vpack.c.b16 %v292, %v291
  %v303 = vpack.c.b16 %v294, %v293
  %v304 = vpack.c.b16 %v296, %v295
  %313 = vmatprep.subr.bf16.mxu0 0
  %314 = vmatpush1.bf16.msra.mxu0 %v297
  %315 = vmatprep.subr.bf16.mxu0 0
  %316 = vmatpush1.bf16.msra.mxu0 %v298
  %317 = vmatprep.subr.bf16.mxu0 0
  %318 = vmatpush1.bf16.msra.mxu0 %v299
  %319 = vmatprep.subr.bf16.mxu0 0
  %320 = vmatpush1.bf16.msra.mxu0 %v300
  %321 = vmatprep.subr.bf16.mxu0 0
  %322 = vmatpush1.bf16.msra.mxu0 %v301
  %323 = vmatprep.subr.bf16.mxu0 0
  %324 = vmatpush1.bf16.msra.mxu0 %v302
  %325 = vmatprep.subr.bf16.mxu0 0
  %326 = vmatpush1.bf16.msra.mxu0 %v303
  %327 = vmatprep.subr.bf16.mxu0 0
  %328 = vmatpush1.bf16.msra.mxu0 %v304
  %329 = vmatprep.subr.bf16.mxu0 0
  %330 = vmatpush1.bf16.msra.mxu0 0
  %331 = vmatprep.subr.bf16.mxu0 0
  %332 = vmatpush1.bf16.msra.mxu0 0
  %333 = vmatprep.subr.bf16.mxu0 0
  %334 = vmatpush1.bf16.msra.mxu0 0
  %335 = vmatprep.subr.bf16.mxu0 0
  %336 = vmatpush1.bf16.msra.mxu0 0
  %337 = vmatprep.subr.bf16.mxu0 0
  %338 = vmatpush1.bf16.msra.mxu0 0
  %339 = vmatprep.subr.bf16.mxu0 0
  %340 = vmatpush1.bf16.msra.mxu0 0
  %341 = vmatprep.subr.bf16.mxu0 0
  %342 = vmatpush1.bf16.msra.mxu0 0
  %343 = vmatprep.subr.bf16.mxu0 0
  %344 = vmatpush1.bf16.msra.mxu0 0
  %345 = vmatprep.mubr.bf16.mxu0 0
  %346 = vmatmul.mubr.bf16.gmra.mrb[0].mxu0 %v261
  %v347 = vpop.f32.mrb[0].mxu0
  %v348 = vadd.f32 %v239, %v347
  %v349 = vpop.f32.mrb[0].mxu0
  %v350 = vpop.f32.mrb[0].mxu0
  %v351 = vadd.f32 %v242, %v350
  %v352 = vpop.f32.mrb[0].mxu0
  %353 = vmatprep.mubr.bf16.mxu0 0
  %354 = vmatmul.mubr.bf16.gmra.mrb[0].mxu0 %v262
  %v355 = vpop.f32.mrb[0].mxu0
  %v356 = vadd.f32 %v247, %v355
  %v357 = vpop.f32.mrb[0].mxu0
  %v358 = vpop.f32.mrb[0].mxu0
  %v359 = vadd.f32 %v250, %v358
  %v360 = vpop.f32.mrb[0].mxu0
  %361 = vdwg.mxu0
  %v362 = vld [vmem:[%s4] sm:$0x1]
  %v364 = vlaneseq
  %v365 = vshrl.u32 %v364, 7
  %v366 = vsub.s32 0, %v365
  %v367 = vrot.slane %v362, %v366
  %v369 = vadd.f32 %v348, %v367
  %v370 = vadd.f32 %v351, %v367
  %v371 = vadd.f32 %v356, %v367
  %v372 = vadd.f32 %v359, %v367
  %v373 = vmax.f32 %v369, 0.0
  %v374 = vmax.f32 %v370, 0.0
  %v375 = vmax.f32 %v371, 0.0
  %v376 = vmax.f32 %v372, 0.0
  %p377 = scmp.eq.s32.totalorder 0, 0
  // Predicated region
  $region22: #{sun_forward.2} parent=0 // pred_check
    %p378 = pneg %p377
  $region23: #{sun_forward.2} parent=0 // pred_check_branch
    %380 = sbr.rel (%p378) target = $region25
  $region24: #{sun_forward.2} parent=0 // pred_region
    %v381 = vlaneseq
    %v382 = vshrl.u32 %v381, 7
    %v383 = vadd.s32 %v382, 8
    %v384 = vadd.s32 %v382, 16
    %v385 = vadd.s32 %v382, 24
    %v386 = vstv %s113
    %v387 = vadd.s32 %v386, %v382
    %v388 = vadd.s32 %v386, %v383
    %v389 = vadd.s32 %v386, %v384
    %v390 = vadd.s32 %v386, %v385
    %vm391 = vcmp.lt.s32.totalorder %v387, 8
    %vm392 = vcmp.lt.s32.totalorder %v388, 8
    %vm393 = vcmp.lt.s32.totalorder %v389, 8
    %vm394 = vcmp.lt.s32.totalorder %v390, 8
    %v395 = vsel %vm391, %v373, 0.0
    %v396 = vsel %vm392, %v374, 0.0
    %v397 = vsel %vm393, %v375, 0.0
    %v398 = vsel %vm394, %v376, 0.0
    %v399 = vpack.c.bf16 %v396, %v395
    %v400 = vpack.c.bf16 %v398, %v397
    %v403 = vunpack.c.l.b16 %v399
    %v404 = vunpack.c.h.b16 %v399
    %v405 = vunpack.c.l.b16 %v400
    %v406 = vunpack.c.h.b16 %v400
    %v407 = vpack.c.b16 %v403, %v403
    %v408 = vpack.c.b16 %v404, %v404
    %v409 = vpack.c.b16 %v405, %v405
    %v410 = vpack.c.b16 %v406, %v406
    %415 = vst [vmem:[%s5] sm:$0xf] %v407
    %416 = vst [vmem:[%s5 + $0x4] sm:$0xf] %v408
    %417 = vst [vmem:[%s5 + $0x8] sm:$0xf] %v409
    %418 = vst [vmem:[%s5 + $0xc] sm:$0xf] %v410
    %v419 = vadd.f32 %v395, %v396
    %v420 = vadd.f32 %v419, %v397
    %v421 = vadd.f32 %v420, %v398
    %v422 = vrot.slane %v421, 4
    %v423 = vadd.f32 %v421, %v422
    %v424 = vrot.slane %v423, 2
    %v425 = vadd.f32 %v423, %v424
    %v426 = vrot.slane %v425, 1
    %v427 = vadd.f32 %v425, %v426
    %428 = vst [vmem:[%s6] sm:$0xff] %v427
  $region25: #{sun_forward.2} parent=0 // pred_fallthru
    _
  %p429 = scmp.ne.s32.totalorder 0, 0
  // Predicated region
  $region26: #{sun_forward.2} parent=0 // pred_check
    %p430 = pneg %p429
  $region27: #{sun_forward.2} parent=0 // pred_check_branch
    %432 = sbr.rel (%p430) target = $region29
  $region28: #{sun_forward.2} parent=0 // pred_region
    %v433 = vpack.c.bf16 %v374, %v373
    %v434 = vpack.c.bf16 %v376, %v375
    %v437 = vunpack.c.l.b16 %v433
    %v438 = vunpack.c.h.b16 %v433
    %v439 = vunpack.c.l.b16 %v434
    %v440 = vunpack.c.h.b16 %v434
    %v441 = vpack.c.b16 %v437, %v437
    %v442 = vpack.c.b16 %v438, %v438
    %v443 = vpack.c.b16 %v439, %v439
    %v444 = vpack.c.b16 %v440, %v440
    %449 = vst [vmem:[%s5] sm:$0xf] %v441
    %450 = vst [vmem:[%s5 + $0x4] sm:$0xf] %v442
    %451 = vst [vmem:[%s5 + $0x8] sm:$0xf] %v443
    %452 = vst [vmem:[%s5 + $0xc] sm:$0xf] %v444
    %v453 = vadd.f32 %v373, %v374
    %v454 = vadd.f32 %v453, %v375
    %v455 = vadd.f32 %v454, %v376
    %v456 = vrot.slane %v455, 4
    %v457 = vadd.f32 %v455, %v456
    %v458 = vrot.slane %v457, 2
    %v459 = vadd.f32 %v457, %v458
    %v460 = vrot.slane %v459, 1
    %v461 = vadd.f32 %v459, %v460
    %462 = vst [vmem:[%s6] sm:$0xff] %v461
  $region29: #{sun_forward.2} parent=0 // pred_fallthru
    _
  // Predicated region
  $region30: #{sun_forward.2} parent=0 // pred_check
    _
  $region31: #{sun_forward.2} parent=0 // pred_check_branch
    %464 = sbr.rel (0) target = $region33
  $region32: #{sun_forward.2} parent=0 // pred_region
    _
  $region33: #{sun_forward.2} parent=0 // pred_fallthru
    _
  // Predicated region
  $region34: #{sun_forward.2} parent=0 // pred_check
    _
  $region35: #{sun_forward.2} parent=0 // pred_check_branch
    %466 = sbr.rel (0) target = $region37
  $region36: #{sun_forward.2} parent=0 // pred_region
    _
  $region37: #{sun_forward.2} parent=0 // pred_fallthru
    _
  // Predicated region
  $region38: #{sun_forward.2} parent=0 // pred_check
    _
  $region39: #{sun_forward.2} parent=0 // pred_check_branch
    %468 = sbr.rel (0) target = $region41
  $region40: #{sun_forward.2} parent=0 // pred_region
    _
  $region41: #{sun_forward.2} parent=0 // pred_fallthru
    _
  // Predicated region
  $region42: #{sun_forward.2} parent=0 // pred_check
    _
  $region43: #{sun_forward.2} parent=0 // pred_check_branch
    %470 = sbr.rel (0) target = $region45
  $region44: #{sun_forward.2} parent=0 // pred_region
    _
  $region45: #{sun_forward.2} parent=0 // pred_fallthru
    _

// kernel: sun_forward.3
$region0: #{sun_forward.3}
  #allocation0 [shape = 'u32[]', space=smem, size = 0x4, offset = 0x4, fixed_abs, tag = 'smem constant byte address 0x4 - core index']
  #allocation1 [shape = 'u32[144,128]{1,0:T(1,128)}', space=vmem, size = 0x12000, scoped, tag = 'internal scratch']
  %s0 = inlined_call_operand.vmem [shape: s8[32,32], index: 0, kind: input, shape index: {}]
  %s1 = inlined_call_operand.vmem [shape: bf16[32,128], index: 1, kind: input, shape index: {}]
  %s2 = inlined_call_operand.vmem [shape: bf16[128,128], index: 2, kind: input, shape index: {}]
  %s3 = inlined_call_operand.vmem [shape: bf16[128,128], index: 3, kind: input, shape index: {}]
  %s4 = inlined_call_operand.vmem [shape: f32[1,128], index: 4, kind: input, shape index: {}]
  %s5 = inlined_call_operand.vmem [shape: f32[32,128], index: 5, kind: output, shape index: {}]
  %s6 = sld [smem:[#allocation0]]
  $region30: #{sun_forward.3} parent=0
    _
  %s8 = ssub.s32 1, %s6
  %s9 = scalar_select 0, %s8, %s6
  // Predicated region
  $region2: #{sun_forward.3} parent=0 // pred_check
    _
  $region3: #{sun_forward.3} parent=0 // pred_check_branch
    %11 = sbr.rel (0) target = $region5
  $region4: #{sun_forward.3} parent=0 // pred_region
    _
  $region5: #{sun_forward.3} parent=0 // pred_fallthru
    _
  // Predicated region
  $region6: #{sun_forward.3} parent=0 // pred_check
    _
  $region7: #{sun_forward.3} parent=0 // pred_check_branch
    %13 = sbr.rel (0) target = $region9
  $region8: #{sun_forward.3} parent=0 // pred_region
    _
  $region9: #{sun_forward.3} parent=0 // pred_fallthru
    _
  // Predicated region
  $region10: #{sun_forward.3} parent=0 // pred_check
    _
  $region11: #{sun_forward.3} parent=0 // pred_check_branch
    %15 = sbr.rel (0) target = $region13
  $region12: #{sun_forward.3} parent=0 // pred_region
    _
  $region13: #{sun_forward.3} parent=0 // pred_fallthru
    _
  // Predicated region
  $region14: #{sun_forward.3} parent=0 // pred_check
    _
  $region15: #{sun_forward.3} parent=0 // pred_check_branch
    %17 = sbr.rel (0) target = $region17
  $region16: #{sun_forward.3} parent=0 // pred_region
    _
  $region17: #{sun_forward.3} parent=0 // pred_fallthru
    _
  // Predicated region
  $region18: #{sun_forward.3} parent=0 // pred_check
    _
  $region19: #{sun_forward.3} parent=0 // pred_check_branch
    %19 = sbr.rel (0) target = $region21
  $region20: #{sun_forward.3} parent=0 // pred_region
    _
  $region21: #{sun_forward.3} parent=0 // pred_fallthru
    _
  %v21 = vld [vmem:[%s0] sm:$0x3]
  %v22 = vld [vmem:[%s0 + $0x2] sm:$0x3]
  %v23 = vld [vmem:[%s0 + $0x4] sm:$0x3]
  %v24 = vld [vmem:[%s0 + $0x6] sm:$0x3]
  %v25 = vunpack.c.l.s8.bf16 %v21
  %v26 = vunpack.c.l.s8.bf16 %v22
  %v27 = vunpack.c.l.s8.bf16 %v23
  %v28 = vunpack.c.l.s8.bf16 %v24
  %v29 = vld [vmem:[%s1] sm:$0xf]
  %v30 = vld [vmem:[%s1 + $0x4] sm:$0xf]
  %v31 = vld [vmem:[%s1 + $0x8] sm:$0xf]
  %v32 = vld [vmem:[%s1 + $0xc] sm:$0xf]
  %v37 = vunpack.c.l.b16 %v25
  %v38 = vunpack.c.l.b16 %v26
  %v39 = vunpack.c.l.b16 %v27
  %v40 = vunpack.c.l.b16 %v28
  %v41 = vpack.c.b16 %v38, %v37
  %v42 = vpack.c.b16 %v40, %v39
  %v47 = vunpack.c.l.b16 %v29
  %v48 = vunpack.c.l.b16 %v30
  %v49 = vunpack.c.l.b16 %v31
  %v50 = vunpack.c.l.b16 %v32
  %v51 = vpack.c.b16 %v48, %v47
  %v52 = vpack.c.b16 %v50, %v49
  %vm55 = vcmask 261120
  %v57 = vsel %vm55, %v41, 0
  %v60 = vsel %vm55, %v42, 0
  %62 = vmatprep.subr.bf16.mxu0 0
  %63 = vmatpush1.bf16.msra.mxu0 %v51
  %64 = vmatprep.subr.bf16.mxu0 0
  %65 = vmatpush1.bf16.msra.mxu0 %v52
  %66 = vmatprep.subr.bf16.mxu0 0
  %67 = vmatpush1.bf16.msra.mxu0 0
  %68 = vmatprep.subr.bf16.mxu0 0
  %69 = vmatpush1.bf16.msra.mxu0 0
  %70 = vmatprep.subr.bf16.mxu0 0
  %71 = vmatpush1.bf16.msra.mxu0 0
  %72 = vmatprep.subr.bf16.mxu0 0
  %73 = vmatpush1.bf16.msra.mxu0 0
  %74 = vmatprep.subr.bf16.mxu0 0
  %75 = vmatpush1.bf16.msra.mxu0 0
  %76 = vmatprep.subr.bf16.mxu0 0
  %77 = vmatpush1.bf16.msra.mxu0 0
  %78 = vmatprep.subr.bf16.mxu0 0
  %79 = vmatpush1.bf16.msra.mxu0 0
  %80 = vmatprep.subr.bf16.mxu0 0
  %81 = vmatpush1.bf16.msra.mxu0 0
  %82 = vmatprep.subr.bf16.mxu0 0
  %83 = vmatpush1.bf16.msra.mxu0 0
  %84 = vmatprep.subr.bf16.mxu0 0
  %85 = vmatpush1.bf16.msra.mxu0 0
  %86 = vmatprep.subr.bf16.mxu0 0
  %87 = vmatpush1.bf16.msra.mxu0 0
  %88 = vmatprep.subr.bf16.mxu0 0
  %89 = vmatpush1.bf16.msra.mxu0 0
  %90 = vmatprep.subr.bf16.mxu0 0
  %91 = vmatpush1.bf16.msra.mxu0 0
  %92 = vmatprep.subr.bf16.mxu0 0
  %93 = vmatpush1.bf16.msra.mxu0 0
  %94 = vmatprep.mubr.bf16.mxu0 0
  %95 = vmatmul.mubr.bf16.gmra.mrb[0].mxu0 %v57
  %v96 = vpop.f32.mrb[0].mxu0
  %v97 = vadd.f32 0.0, %v96
  %v98 = vpop.f32.mrb[0].mxu0
  %v99 = vpop.f32.mrb[0].mxu0
  %v100 = vadd.f32 0.0, %v99
  %v101 = vpop.f32.mrb[0].mxu0
  %102 = vmatprep.mubr.bf16.mxu0 0
  %103 = vmatmul.mubr.bf16.gmra.mrb[0].mxu0 %v60
  %v104 = vpop.f32.mrb[0].mxu0
  %v105 = vadd.f32 0.0, %v104
  %v106 = vpop.f32.mrb[0].mxu0
  %v107 = vpop.f32.mrb[0].mxu0
  %v108 = vadd.f32 0.0, %v107
  %v109 = vpop.f32.mrb[0].mxu0
  %110 = vdwg.mxu0
  %v111 = vpack.c.bf16 %v100, %v97
  %v112 = vpack.c.bf16 %v108, %v105
  %v113 = vld [vmem:[%s3] sm:$0xf]
  %v114 = vld [vmem:[%s3 + $0x4] sm:$0xf]
  %v115 = vld [vmem:[%s3 + $0x8] sm:$0xf]
  %v116 = vld [vmem:[%s3 + $0xc] sm:$0xf]
  %v117 = vld [vmem:[%s3 + $0x10] sm:$0xf]
  %v118 = vld [vmem:[%s3 + $0x14] sm:$0xf]
  %v119 = vld [vmem:[%s3 + $0x18] sm:$0xf]
  %v120 = vld [vmem:[%s3 + $0x1c] sm:$0xf]
  %v121 = vld [vmem:[%s3 + $0x20] sm:$0xf]
  %v122 = vld [vmem:[%s3 + $0x24] sm:$0xf]
  %v123 = vld [vmem:[%s3 + $0x28] sm:$0xf]
  %v124 = vld [vmem:[%s3 + $0x2c] sm:$0xf]
  %v125 = vld [vmem:[%s3 + $0x30] sm:$0xf]
  %v126 = vld [vmem:[%s3 + $0x34] sm:$0xf]
  %v127 = vld [vmem:[%s3 + $0x38] sm:$0xf]
  %v128 = vld [vmem:[%s3 + $0x3c] sm:$0xf]
  %s129 = smul.u32 0, 32
  %s130 = sshra.s32 %s129, 3
  %s131 = sand.u32 %s129, 7
  %s132 = smul.addr %s130, 4
  %s133 = scalar_lea.vmem %s1, %s132
  %v134 = vld [vmem:[%s133] sm:$0xf]
  %v135 = vld [vmem:[%s133 + $0x4] sm:$0xf]
  %v136 = vld [vmem:[%s133 + $0x8] sm:$0xf]
  %v137 = vld [vmem:[%s133 + $0xc] sm:$0xf]
  %v138 = vld [vmem:[%s2] sm:$0xf]
  %v139 = vld [vmem:[%s2 + $0x4] sm:$0xf]
  %v140 = vld [vmem:[%s2 + $0x8] sm:$0xf]
  %v141 = vld [vmem:[%s2 + $0xc] sm:$0xf]
  %v142 = vld [vmem:[%s2 + $0x10] sm:$0xf]
  %v143 = vld [vmem:[%s2 + $0x14] sm:$0xf]
  %v144 = vld [vmem:[%s2 + $0x18] sm:$0xf]
  %v145 = vld [vmem:[%s2 + $0x1c] sm:$0xf]
  %v146 = vld [vmem:[%s2 + $0x20] sm:$0xf]
  %v147 = vld [vmem:[%s2 + $0x24] sm:$0xf]
  %v148 = vld [vmem:[%s2 + $0x28] sm:$0xf]
  %v149 = vld [vmem:[%s2 + $0x2c] sm:$0xf]
  %v150 = vld [vmem:[%s2 + $0x30] sm:$0xf]
  %v151 = vld [vmem:[%s2 + $0x34] sm:$0xf]
  %v152 = vld [vmem:[%s2 + $0x38] sm:$0xf]
  %v153 = vld [vmem:[%s2 + $0x3c] sm:$0xf]
  %v158 = vunpack.c.l.b16 %v134
  %v159 = vunpack.c.l.b16 %v135
  %v160 = vunpack.c.l.b16 %v136
  %v161 = vunpack.c.l.b16 %v137
  %v162 = vpack.c.b16 %v159, %v158
  %v163 = vpack.c.b16 %v161, %v160
  %v182 = vunpack.c.l.b16 %v138
  %v183 = vunpack.c.l.b16 %v139
  %v184 = vunpack.c.l.b16 %v140
  %v185 = vunpack.c.l.b16 %v141
  %v186 = vunpack.c.l.b16 %v142
  %v187 = vunpack.c.l.b16 %v143
  %v188 = vunpack.c.l.b16 %v144
  %v189 = vunpack.c.l.b16 %v145
  %v190 = vunpack.c.l.b16 %v146
  %v191 = vunpack.c.l.b16 %v147
  %v192 = vunpack.c.l.b16 %v148
  %v193 = vunpack.c.l.b16 %v149
  %v194 = vunpack.c.l.b16 %v150
  %v195 = vunpack.c.l.b16 %v151
  %v196 = vunpack.c.l.b16 %v152
  %v197 = vunpack.c.l.b16 %v153
  %v198 = vpack.c.b16 %v183, %v182
  %v199 = vpack.c.b16 %v185, %v184
  %v200 = vpack.c.b16 %v187, %v186
  %v201 = vpack.c.b16 %v189, %v188
  %v202 = vpack.c.b16 %v191, %v190
  %v203 = vpack.c.b16 %v193, %v192
  %v204 = vpack.c.b16 %v195, %v194
  %v205 = vpack.c.b16 %v197, %v196
  %214 = vmatprep.subr.bf16.mxu0 0
  %215 = vmatpush1.bf16.msra.mxu0 %v198
  %216 = vmatprep.subr.bf16.mxu0 0
  %217 = vmatpush1.bf16.msra.mxu0 %v199
  %218 = vmatprep.subr.bf16.mxu0 0
  %219 = vmatpush1.bf16.msra.mxu0 %v200
  %220 = vmatprep.subr.bf16.mxu0 0
  %221 = vmatpush1.bf16.msra.mxu0 %v201
  %222 = vmatprep.subr.bf16.mxu0 0
  %223 = vmatpush1.bf16.msra.mxu0 %v202
  %224 = vmatprep.subr.bf16.mxu0 0
  %225 = vmatpush1.bf16.msra.mxu0 %v203
  %226 = vmatprep.subr.bf16.mxu0 0
  %227 = vmatpush1.bf16.msra.mxu0 %v204
  %228 = vmatprep.subr.bf16.mxu0 0
  %229 = vmatpush1.bf16.msra.mxu0 %v205
  %230 = vmatprep.subr.bf16.mxu0 0
  %231 = vmatpush1.bf16.msra.mxu0 0
  %232 = vmatprep.subr.bf16.mxu0 0
  %233 = vmatpush1.bf16.msra.mxu0 0
  %234 = vmatprep.subr.bf16.mxu0 0
  %235 = vmatpush1.bf16.msra.mxu0 0
  %236 = vmatprep.subr.bf16.mxu0 0
  %237 = vmatpush1.bf16.msra.mxu0 0
  %238 = vmatprep.subr.bf16.mxu0 0
  %239 = vmatpush1.bf16.msra.mxu0 0
  %240 = vmatprep.subr.bf16.mxu0 0
  %241 = vmatpush1.bf16.msra.mxu0 0
  %242 = vmatprep.subr.bf16.mxu0 0
  %243 = vmatpush1.bf16.msra.mxu0 0
  %244 = vmatprep.subr.bf16.mxu0 0
  %245 = vmatpush1.bf16.msra.mxu0 0
  %246 = vmatprep.mubr.bf16.mxu0 0
  %247 = vmatmul.mubr.bf16.gmra.mrb[0].mxu0 %v162
  %v248 = vpop.f32.mrb[0].mxu0
  %v249 = vadd.f32 0.0, %v248
  %v250 = vpop.f32.mrb[0].mxu0
  %v251 = vpop.f32.mrb[0].mxu0
  %v252 = vadd.f32 0.0, %v251
  %v253 = vpop.f32.mrb[0].mxu0
  %254 = vmatprep.mubr.bf16.mxu0 0
  %255 = vmatmul.mubr.bf16.gmra.mrb[0].mxu0 %v163
  %v256 = vpop.f32.mrb[0].mxu0
  %v257 = vadd.f32 0.0, %v256
  %v258 = vpop.f32.mrb[0].mxu0
  %v259 = vpop.f32.mrb[0].mxu0
  %v260 = vadd.f32 0.0, %v259
  %v261 = vpop.f32.mrb[0].mxu0
  %262 = vdwg.mxu0
  %v279 = vunpack.c.l.b16 %v113
  %v280 = vunpack.c.l.b16 %v114
  %v281 = vunpack.c.l.b16 %v115
  %v282 = vunpack.c.l.b16 %v116
  %v283 = vunpack.c.l.b16 %v117
  %v284 = vunpack.c.l.b16 %v118
  %v285 = vunpack.c.l.b16 %v119
  %v286 = vunpack.c.l.b16 %v120
  %v287 = vunpack.c.l.b16 %v121
  %v288 = vunpack.c.l.b16 %v122
  %v289 = vunpack.c.l.b16 %v123
  %v290 = vunpack.c.l.b16 %v124
  %v291 = vunpack.c.l.b16 %v125
  %v292 = vunpack.c.l.b16 %v126
  %v293 = vunpack.c.l.b16 %v127
  %v294 = vunpack.c.l.b16 %v128
  %v295 = vpack.c.b16 %v280, %v279
  %v296 = vpack.c.b16 %v282, %v281
  %v297 = vpack.c.b16 %v284, %v283
  %v298 = vpack.c.b16 %v286, %v285
  %v299 = vpack.c.b16 %v288, %v287
  %v300 = vpack.c.b16 %v290, %v289
  %v301 = vpack.c.b16 %v292, %v291
  %v302 = vpack.c.b16 %v294, %v293
  %311 = vmatprep.subr.bf16.mxu0 0
  %312 = vmatpush1.bf16.msra.mxu0 %v295
  %313 = vmatprep.subr.bf16.mxu0 0
  %314 = vmatpush1.bf16.msra.mxu0 %v296
  %315 = vmatprep.subr.bf16.mxu0 0
  %316 = vmatpush1.bf16.msra.mxu0 %v297
  %317 = vmatprep.subr.bf16.mxu0 0
  %318 = vmatpush1.bf16.msra.mxu0 %v298
  %319 = vmatprep.subr.bf16.mxu0 0
  %320 = vmatpush1.bf16.msra.mxu0 %v299
  %321 = vmatprep.subr.bf16.mxu0 0
  %322 = vmatpush1.bf16.msra.mxu0 %v300
  %323 = vmatprep.subr.bf16.mxu0 0
  %324 = vmatpush1.bf16.msra.mxu0 %v301
  %325 = vmatprep.subr.bf16.mxu0 0
  %326 = vmatpush1.bf16.msra.mxu0 %v302
  %327 = vmatprep.subr.bf16.mxu0 0
  %328 = vmatpush1.bf16.msra.mxu0 0
  %329 = vmatprep.subr.bf16.mxu0 0
  %330 = vmatpush1.bf16.msra.mxu0 0
  %331 = vmatprep.subr.bf16.mxu0 0
  %332 = vmatpush1.bf16.msra.mxu0 0
  %333 = vmatprep.subr.bf16.mxu0 0
  %334 = vmatpush1.bf16.msra.mxu0 0
  %335 = vmatprep.subr.bf16.mxu0 0
  %336 = vmatpush1.bf16.msra.mxu0 0
  %337 = vmatprep.subr.bf16.mxu0 0
  %338 = vmatpush1.bf16.msra.mxu0 0
  %339 = vmatprep.subr.bf16.mxu0 0
  %340 = vmatpush1.bf16.msra.mxu0 0
  %341 = vmatprep.subr.bf16.mxu0 0
  %342 = vmatpush1.bf16.msra.mxu0 0
  %343 = vmatprep.mubr.bf16.mxu0 0
  %344 = vmatmul.mubr.bf16.gmra.mrb[0].mxu0 %v111
  %v345 = vpop.f32.mrb[0].mxu0
  %v346 = vadd.f32 %v249, %v345
  %v347 = vpop.f32.mrb[0].mxu0
  %v348 = vpop.f32.mrb[0].mxu0
  %v349 = vadd.f32 %v252, %v348
  %v350 = vpop.f32.mrb[0].mxu0
  %351 = vmatprep.mubr.bf16.mxu0 0
  %352 = vmatmul.mubr.bf16.gmra.mrb[0].mxu0 %v112
  %v353 = vpop.f32.mrb[0].mxu0
  %v354 = vadd.f32 %v257, %v353
  %v355 = vpop.f32.mrb[0].mxu0
  %v356 = vpop.f32.mrb[0].mxu0
  %v357 = vadd.f32 %v260, %v356
  %v358 = vpop.f32.mrb[0].mxu0
  %359 = vdwg.mxu0
  %v360 = vld [vmem:[%s4] sm:$0x1]
  %v362 = vlaneseq
  %v363 = vshrl.u32 %v362, 7
  %v364 = vsub.s32 0, %v363
  %v365 = vrot.slane %v360, %v364
  %v367 = vadd.f32 %v346, %v365
  %v368 = vadd.f32 %v349, %v365
  %v369 = vadd.f32 %v354, %v365
  %v370 = vadd.f32 %v357, %v365
  %v371 = vlaneseq
  %v372 = vand.u32 %v371, 127
  %vm373 = vcmp.lt.s32.totalorder %v372, 8
  %v374 = vsel %vm373, %v367, -1e+30
  %v375 = vsel %vm373, %v368, -1e+30
  %v376 = vsel %vm373, %v369, -1e+30
  %v377 = vsel %vm373, %v370, -1e+30
  %378 = vmax.xlane.f32.xlu0 %v374
  %v379 = vpop.xlane.xlu0 %378
  %380 = vmax.xlane.f32.xlu0 %v375
  %v381 = vpop.xlane.xlu0 %380
  %382 = vmax.xlane.f32.xlu0 %v376
  %v383 = vpop.xlane.xlu0 %382
  %384 = vmax.xlane.f32.xlu0 %v377
  %v385 = vpop.xlane.xlu0 %384
  %v386 = vsub.f32 %v374, %v379
  %v387 = vsub.f32 %v375, %v381
  %v388 = vsub.f32 %v376, %v383
  %v389 = vsub.f32 %v377, %v385
  %v390 = vmul.f32 %v386, 1.442695
  %v391 = vpow.pop %v390
  %v392 = vmul.f32 %v387, 1.442695
  %v393 = vpow.pop %v392
  %v394 = vmul.f32 %v388, 1.442695
  %v395 = vpow.pop %v394
  %v396 = vmul.f32 %v389, 1.442695
  %v397 = vpow.pop %v396
  %398 = vadd.xlane.f32.xlu0 %v391
  %v399 = vpop.xlane.xlu0 %398
  %400 = vadd.xlane.f32.xlu0 %v393
  %v401 = vpop.xlane.xlu0 %400
  %402 = vadd.xlane.f32.xlu0 %v395
  %v403 = vpop.xlane.xlu0 %402
  %404 = vadd.xlane.f32.xlu0 %v397
  %v405 = vpop.xlane.xlu0 %404
  %v406 = vlog2.pop %v399
  %v407 = vmul.f32 %v406, 0.6931472
  %v408 = vlog2.pop %v401
  %v409 = vmul.f32 %v408, 0.6931472
  %v410 = vlog2.pop %v403
  %v411 = vmul.f32 %v410, 0.6931472
  %v412 = vlog2.pop %v405
  %v413 = vmul.f32 %v412, 0.6931472
  %v414 = vsub.f32 %v386, %v407
  %v415 = vsub.f32 %v387, %v409
  %v416 = vsub.f32 %v388, %v411
  %v417 = vsub.f32 %v389, %v413
  %418 = vst [vmem:[%s5] sm:$0xff] %v414
  %419 = vst [vmem:[%s5 + $0x8] sm:$0xff] %v415
  %420 = vst [vmem:[%s5 + $0x10] sm:$0xff] %v416
  %421 = vst [vmem:[%s5 + $0x18] sm:$0xff] %v417
  // Predicated region
  $region22: #{sun_forward.3} parent=0 // pred_check
    _
  $region23: #{sun_forward.3} parent=0 // pred_check_branch
    %423 = sbr.rel (0) target = $region25
  $region24: #{sun_forward.3} parent=0 // pred_region
    _
  $region25: #{sun_forward.3} parent=0 // pred_fallthru
    _
  // Predicated region
  $region26: #{sun_forward.3} parent=0 // pred_check
    _
  $region27: #{sun_forward.3} parent=0 // pred_check_branch
    %425 = sbr.rel (0) target = $region29
  $region28: #{sun_forward.3} parent=0 // pred_region
    _
  $region29: #{sun_forward.3} parent=0 // pred_fallthru
    _

</llo_original>
